<compile_context>
chip_gen: v7x
topology: tpu7x:2x2x1
jax: 0.10.0
libtpu: 0.0.40
codegen_flags: <defaults>
</compile_context>

<pallas_src>
import math

import jax
import jax.numpy as jnp
from jax.experimental import pallas as pl
from jax.experimental.pallas import tpu as pltpu


# ----------------------------- Pallas kernel --------------------------------

def timestep_embedder_kernel(t_ref, freqs_ref, w1c_ref, w1s_ref, b1_ref,
                             w2_ref, b2_ref, o_ref):
    # t_ref:     (TN, 1)       f32   (one batch tile of timesteps)
    # freqs_ref: (1, half)     f32   (grid-invariant)
    # w1c_ref:   (half, H)     bf16  (fc1 rows matching the cos half)
    # w1s_ref:   (half, H)     bf16  (fc1 rows matching the sin half)
    # b1_ref:    (1, H)        f32
    # w2_ref:    (H, H)        bf16
    # b2_ref:    (1, H)        f32
    # o_ref:     (TN, H)       f32
    t = t_ref[...]                              # (TN, 1)
    freqs = freqs_ref[...]                      # (1, half)
    args = t * freqs                            # (TN, half), f32

    cos_e = jnp.cos(args).astype(jnp.bfloat16)  # (TN, half)
    sin_e = jnp.sin(args).astype(jnp.bfloat16)  # (TN, half)

    # fc1: cat([cos, sin]) @ W1  ==  cos @ W1[:half] + sin @ W1[half:]
    h = (jnp.dot(cos_e, w1c_ref[...], preferred_element_type=jnp.float32)
         + jnp.dot(sin_e, w1s_ref[...], preferred_element_type=jnp.float32)
         + b1_ref[...])                         # (TN, H) f32

    # SiLU in f32 (logistic runs on the EUP slot)
    h = h * jax.nn.sigmoid(h)

    # fc2
    out = jnp.dot(h.astype(jnp.bfloat16), w2_ref[...],
                  preferred_element_type=jnp.float32) + b2_ref[...]

    o_ref[...] = out


# --------------------------------- wrapper -----------------------------------

def timestep_embedder(t, params, *, freq_dim=256, block_n=None):
    N = t.shape[0]
    hidden = params["w2"].shape[1]
    half = freq_dim // 2
    assert freq_dim % 2 == 0, "odd frequency_embedding_size not supported"

    # Batch tile: whole batch for small N (single grid step, minimal per-step
    # overhead), otherwise 256-row tiles (multiple of 8 sublanes).
    if block_n is None:
        block_n = N if N <= 1024 else 256
    n_pad = block_n * pl.cdiv(N, block_n)
    assert block_n == n_pad or block_n % 8 == 0

    # Hoisted constants / layout prep (pure XLA, outside the kernel).
    freqs = jnp.exp(
        -math.log(10000.0) * jnp.arange(half, dtype=jnp.float32) / half
    ).reshape(1, half)
    t2 = t.astype(jnp.float32).reshape(N, 1)
    if n_pad != N:
        t2 = jnp.pad(t2, ((0, n_pad - N), (0, 0)))
    w1c = params["w1"][:half]     # (half, H) bf16
    w1s = params["w1"][half:]     # (half, H) bf16

    def const_spec(shape):
        # grid-invariant block: fetched once, stays VMEM-resident
        return pl.BlockSpec(shape, lambda i: (0, 0))

    grid = (n_pad // block_n,)
    in_specs = [
        pl.BlockSpec((block_n, 1), lambda i: (i, 0)),   # t tile
        const_spec((1, half)),                          # freqs
        const_spec((half, hidden)),                     # w1 (cos half)
        const_spec((half, hidden)),                     # w1 (sin half)
        const_spec((1, hidden)),                        # b1
        const_spec((hidden, hidden)),                   # w2
        const_spec((1, hidden)),                        # b2
    ]
    out_spec = pl.BlockSpec((block_n, hidden), lambda i: (i, 0))

    out = pl.pallas_call(
        timestep_embedder_kernel,
        out_shape=jax.ShapeDtypeStruct((n_pad, hidden), jnp.float32),
        grid_spec=pltpu.PrefetchScalarGridSpec(
            num_scalar_prefetch=0,
            grid=grid,
            in_specs=in_specs,
            out_specs=out_spec,
        ),
        compiler_params=pltpu.CompilerParams(
            dimension_semantics=("parallel",)),
    )(t2, freqs, w1c, w1s, params["b1"], params["w2"], params["b2"])

    return out[:N] if n_pad != N else out


# ------------------------------ param init -----------------------------------

def init_params(key, freq_dim, hidden):
    k1, k2, k3, k4 = jax.random.split(key, 4)
    # Weights pre-transposed to (in, out); stored bf16 (MXU-native, halves
    # weight HBM/VMEM). Biases stay f32.
    return {
        "w1": (0.05 * jax.random.normal(k1, (freq_dim, hidden), jnp.float32)
               ).astype(jnp.bfloat16),
        "b1": 0.05 * jax.random.normal(k2, (1, hidden), jnp.float32),
        "w2": (0.05 * jax.random.normal(k3, (hidden, hidden), jnp.float32)
               ).astype(jnp.bfloat16),
        "b2": 0.05 * jax.random.normal(k4, (1, hidden), jnp.float32),
    }


# ------------------------------ JAX reference ---------------------------------

def reference(t, params, freq_dim=256):
    half = freq_dim // 2
    freqs = jnp.exp(
        -math.log(10000.0) * jnp.arange(half, dtype=jnp.float32) / half)
    args = t.astype(jnp.float32)[:, None] * freqs[None]
    emb = jnp.concatenate([jnp.cos(args), jnp.sin(args)], axis=-1)
    w1 = params["w1"].astype(jnp.float32)
    w2 = params["w2"].astype(jnp.float32)
    h = emb @ w1 + params["b1"]
    h = h * jax.nn.sigmoid(h)        # SiLU
    return h @ w2 + params["b2"]


# ---------------------------------- main --------------------------------------

if __name__ == "__main__":
    N = 16                      # batch of timesteps
    hidden_size = 128           # small but lane-dense hidden size
    freq_dim = 256              # module default frequency_embedding_size

    root = jax.random.PRNGKey(0)
    kt, kp = jax.random.split(root)
    t = jax.random.uniform(kt, (N,), jnp.float32, 0.0, 1000.0)
    params = init_params(kp, freq_dim, hidden_size)

    out = jax.block_until_ready(timestep_embedder(t, params, freq_dim=freq_dim))
    ref = jax.block_until_ready(reference(t, params, freq_dim))

    assert out.shape == (N, hidden_size)
    assert jnp.allclose(out, ref, rtol=2e-2, atol=2e-2), \
        float(jnp.max(jnp.abs(out - ref)))

    print("KERNEL_OK")
</pallas_src>

<mosaic_0001>
module attributes {stable_mosaic.version = 11 : i64} {
  func.func @timestep_embedder_kernel(%arg0: i32, %arg1: memref<16x1xf32, #tpu.memory_space<vmem>>, %arg2: memref<1x128xf32, #tpu.memory_space<vmem>>, %arg3: memref<128x128xbf16, #tpu.memory_space<vmem>>, %arg4: memref<128x128xbf16, #tpu.memory_space<vmem>>, %arg5: memref<1x128xf32, #tpu.memory_space<vmem>>, %arg6: memref<128x128xbf16, #tpu.memory_space<vmem>>, %arg7: memref<1x128xf32, #tpu.memory_space<vmem>>, %arg8: memref<16x128xf32, #tpu.memory_space<vmem>>) attributes {dimension_semantics = [#tpu.dimension_semantics<parallel>], iteration_bounds = array<i64: 1>, scalar_prefetch = 0 : i64, scratch_operands = 0 : i64, tpu.core_type = #tpu.core_type<tc>, window_params = [{transform_indices = @transform_0, window_bounds = array<i64: 16, 1>}, {pipeline_mode = #tpu.pipeline_mode<synchronous>, transform_indices = @transform_1, window_bounds = array<i64: 1, 128>}, {pipeline_mode = #tpu.pipeline_mode<synchronous>, transform_indices = @transform_2, window_bounds = array<i64: 128, 128>}, {pipeline_mode = #tpu.pipeline_mode<synchronous>, transform_indices = @transform_3, window_bounds = array<i64: 128, 128>}, {pipeline_mode = #tpu.pipeline_mode<synchronous>, transform_indices = @transform_4, window_bounds = array<i64: 1, 128>}, {pipeline_mode = #tpu.pipeline_mode<synchronous>, transform_indices = @transform_5, window_bounds = array<i64: 128, 128>}, {pipeline_mode = #tpu.pipeline_mode<synchronous>, transform_indices = @transform_6, window_bounds = array<i64: 1, 128>}, {transform_indices = @transform_7, window_bounds = array<i64: 16, 128>}]} {
    %c0 = arith.constant 0 : index
    %c0_0 = arith.constant 0 : index
    %0 = vector.load %arg1[%c0, %c0_0] : memref<16x1xf32, #tpu.memory_space<vmem>>, vector<16x1xf32>
    %c0_1 = arith.constant 0 : index
    %c0_2 = arith.constant 0 : index
    %1 = vector.load %arg2[%c0_1, %c0_2] : memref<1x128xf32, #tpu.memory_space<vmem>>, vector<1x128xf32>
    %2 = vector.broadcast %0 : vector<16x1xf32> to vector<16x128xf32>
    %3 = vector.broadcast %1 : vector<1x128xf32> to vector<16x128xf32>
    %4 = arith.mulf %2, %3 : vector<16x128xf32>
    %5 = math.cos %4 : vector<16x128xf32>
    %6 = arith.truncf %5 : vector<16x128xf32> to vector<16x128xbf16>
    %7 = math.sin %4 : vector<16x128xf32>
    %8 = arith.truncf %7 : vector<16x128xf32> to vector<16x128xbf16>
    %c0_3 = arith.constant 0 : index
    %c0_4 = arith.constant 0 : index
    %9 = vector.load %arg3[%c0_3, %c0_4] : memref<128x128xbf16, #tpu.memory_space<vmem>>, vector<128x128xbf16>
    %cst = arith.constant dense<0.000000e+00> : vector<16x128xf32>
    %10 = tpu.matmul %6, %9, %cst {dimension_numbers = #tpu.dot_dimension_numbers<[1], [0], [0], [1], [0, 0, 1, 1], [], []>} : vector<16x128xbf16>, vector<128x128xbf16>, vector<16x128xf32> -> vector<16x128xf32>
    %c0_5 = arith.constant 0 : index
    %c0_6 = arith.constant 0 : index
    %11 = vector.load %arg4[%c0_5, %c0_6] : memref<128x128xbf16, #tpu.memory_space<vmem>>, vector<128x128xbf16>
    %cst_7 = arith.constant dense<0.000000e+00> : vector<16x128xf32>
    %12 = tpu.matmul %8, %11, %cst_7 {dimension_numbers = #tpu.dot_dimension_numbers<[1], [0], [0], [1], [0, 0, 1, 1], [], []>} : vector<16x128xbf16>, vector<128x128xbf16>, vector<16x128xf32> -> vector<16x128xf32>
    %13 = arith.addf %10, %12 : vector<16x128xf32>
    %c0_8 = arith.constant 0 : index
    %c0_9 = arith.constant 0 : index
    %14 = vector.load %arg5[%c0_8, %c0_9] : memref<1x128xf32, #tpu.memory_space<vmem>>, vector<1x128xf32>
    %15 = vector.broadcast %14 : vector<1x128xf32> to vector<16x128xf32>
    %16 = arith.addf %13, %15 : vector<16x128xf32>
    %17 = arith.negf %16 : vector<16x128xf32>
    %18 = math.exp %17 : vector<16x128xf32>
    %cst_10 = arith.constant 1.000000e+00 : f32
    %19 = vector.broadcast %cst_10 : f32 to vector<16x128xf32>
    %20 = arith.addf %19, %18 : vector<16x128xf32>
    %21 = arith.divf %19, %20 : vector<16x128xf32>
    %22 = arith.mulf %16, %21 : vector<16x128xf32>
    %23 = arith.truncf %22 : vector<16x128xf32> to vector<16x128xbf16>
    %c0_11 = arith.constant 0 : index
    %c0_12 = arith.constant 0 : index
    %24 = vector.load %arg6[%c0_11, %c0_12] : memref<128x128xbf16, #tpu.memory_space<vmem>>, vector<128x128xbf16>
    %cst_13 = arith.constant dense<0.000000e+00> : vector<16x128xf32>
    %25 = tpu.matmul %23, %24, %cst_13 {dimension_numbers = #tpu.dot_dimension_numbers<[1], [0], [0], [1], [0, 0, 1, 1], [], []>} : vector<16x128xbf16>, vector<128x128xbf16>, vector<16x128xf32> -> vector<16x128xf32>
    %c0_14 = arith.constant 0 : index
    %c0_15 = arith.constant 0 : index
    %26 = vector.load %arg7[%c0_14, %c0_15] : memref<1x128xf32, #tpu.memory_space<vmem>>, vector<1x128xf32>
    %27 = vector.broadcast %26 : vector<1x128xf32> to vector<16x128xf32>
    %28 = arith.addf %25, %27 : vector<16x128xf32>
    %c0_16 = arith.constant 0 : index
    %c0_17 = arith.constant 0 : index
    %29 = vector.load %arg8[%c0_16, %c0_17] : memref<16x128xf32, #tpu.memory_space<vmem>>, vector<16x128xf32>
    tpu.vector_store %arg8[%c0_16, %c0_17], %28 {strides = array<i32>} : memref<16x128xf32, #tpu.memory_space<vmem>>, vector<16x128xf32>,
    return
  }
  func.func @transform_0(%arg0: i32) -> (i32, i32) {
    %c0_i32 = arith.constant 0 : i32
    %c0_i32_0 = arith.constant 0 : i32
    return %arg0, %c0_i32 : i32, i32
  }
  func.func @transform_1(%arg0: i32) -> (i32, i32) {
    %c0_i32 = arith.constant 0 : i32
    %c0_i32_0 = arith.constant 0 : i32
    %c0_i32_1 = arith.constant 0 : i32
    return %c0_i32, %c0_i32_0 : i32, i32
  }
  func.func @transform_2(%arg0: i32) -> (i32, i32) {
    %c0_i32 = arith.constant 0 : i32
    %c0_i32_0 = arith.constant 0 : i32
    %c0_i32_1 = arith.constant 0 : i32
    return %c0_i32, %c0_i32_0 : i32, i32
  }
  func.func @transform_3(%arg0: i32) -> (i32, i32) {
    %c0_i32 = arith.constant 0 : i32
    %c0_i32_0 = arith.constant 0 : i32
    %c0_i32_1 = arith.constant 0 : i32
    return %c0_i32, %c0_i32_0 : i32, i32
  }
  func.func @transform_4(%arg0: i32) -> (i32, i32) {
    %c0_i32 = arith.constant 0 : i32
    %c0_i32_0 = arith.constant 0 : i32
    %c0_i32_1 = arith.constant 0 : i32
    return %c0_i32, %c0_i32_0 : i32, i32
  }
  func.func @transform_5(%arg0: i32) -> (i32, i32) {
    %c0_i32 = arith.constant 0 : i32
    %c0_i32_0 = arith.constant 0 : i32
    %c0_i32_1 = arith.constant 0 : i32
    return %c0_i32, %c0_i32_0 : i32, i32
  }
  func.func @transform_6(%arg0: i32) -> (i32, i32) {
    %c0_i32 = arith.constant 0 : i32
    %c0_i32_0 = arith.constant 0 : i32
    %c0_i32_1 = arith.constant 0 : i32
    return %c0_i32, %c0_i32_0 : i32, i32
  }
  func.func @transform_7(%arg0: i32) -> (i32, i32) {
    %c0_i32 = arith.constant 0 : i32
    %c0_i32_0 = arith.constant 0 : i32
    return %arg0, %c0_i32 : i32, i32
  }
}

</mosaic_0001>

<llo_original>
// kernel: tpu_custom_call.1
$region0: #{tpu_custom_call.1}
  #allocation0 [shape = 'u32[]', space=smem, size = 0x4, offset = 0x4, fixed_abs, tag = 'smem constant byte address 0x4 - core index']
  #allocation1 [shape = 'u32[144,128]{1,0:T(1,128)}', space=vmem, size = 0x12000, scoped, tag = 'internal scratch']
  %s0 = inlined_call_operand.vmem [shape: f32[16,1], index: 0, kind: input, shape index: {}]
  %s1 = inlined_call_operand.vmem [shape: f32[1,128], index: 1, kind: input, shape index: {}]
  %s2 = inlined_call_operand.hbm [shape: bf16[128,128], index: 2, kind: input, shape index: {}]
  %s3 = inlined_call_operand.hbm [shape: bf16[128,128], index: 3, kind: input, shape index: {}]
  %s4 = inlined_call_operand.vmem [shape: f32[1,128], index: 4, kind: input, shape index: {}]
  %s5 = inlined_call_operand.hbm [shape: bf16[128,128], index: 5, kind: input, shape index: {}]
  %s6 = inlined_call_operand.vmem [shape: f32[1,128], index: 6, kind: input, shape index: {}]
  %s7 = inlined_call_operand.hbm [shape: f32[16,128], index: 7, kind: output, shape index: {}]
  %s8 = sld [smem:[#allocation0]]
  $region50: #{tpu_custom_call.1} parent=0
    _
  %s10 = ssub.s32 1, %s8
  %s11 = scalar_select 0, %s10, %s8
  $region1: #{tpu_custom_call.1} parent=0
    #allocation2 [shape = 'u8[32768]{0}', space=vmem, size = 0x8000, scoped, tag = 'input window, operand 2, single buffered']
    #allocation3 [shape = 's32[1]{0}', space=sflag, size = 0x4, scoped, tag = 'scoped memory for tpu_custom_call.1']
    #allocation4 [shape = 's32[1]{0}', space=sflag, size = 0x4, scoped, tag = 'scoped memory for tpu_custom_call.1']
    #allocation5 [shape = 'u8[32768]{0}', space=vmem, size = 0x8000, scoped, tag = 'input window, operand 3, single buffered']
    #allocation6 [shape = 's32[1]{0}', space=sflag, size = 0x4, scoped, tag = 'scoped memory for tpu_custom_call.1']
    #allocation7 [shape = 'u8[32768]{0}', space=vmem, size = 0x8000, scoped, tag = 'input window, operand 5, single buffered']
    #allocation8 [shape = 'u8[8192]{0}', space=vmem, size = 0x2000, scoped, tag = 'output window, operand 0, single buffered']
    %12 = vsyncpa [#allocation3], 0
    %13 = vsyncpa [#allocation6], 0
    %14 = vsyncpa [#allocation4], 0
    // Predicated region
    $region2: #{tpu_custom_call.1} parent=1 // pred_check
      _
    $region3: #{tpu_custom_call.1} parent=1 // pred_check_branch
      %16 = sbr.rel (0) target = $region5
    $region4: #{tpu_custom_call.1} parent=1 // pred_region
      _
    $region5: #{tpu_custom_call.1} parent=1 // pred_fallthru
      _
    // Predicated region
    $region6: #{tpu_custom_call.1} parent=1 // pred_check
      _
    $region7: #{tpu_custom_call.1} parent=1 // pred_check_branch
      %18 = sbr.rel (0) target = $region9
    $region8: #{tpu_custom_call.1} parent=1 // pred_region
      _
    $region9: #{tpu_custom_call.1} parent=1 // pred_fallthru
      _
    // Predicated region
    $region10: #{tpu_custom_call.1} parent=1 // pred_check
      _
    $region11: #{tpu_custom_call.1} parent=1 // pred_check_branch
      %20 = sbr.rel (0) target = $region13
    $region12: #{tpu_custom_call.1} parent=1 // pred_region
      %s22 = ssub.s32 1024, 1024
      %23 = vsyncadd [#allocation3], %s22
      %s24 = sshll.u32 [#allocation2], 4
      %s25 = int_to_ptr.vmem [resolvable:$true] %s24
      %30 = dma.hbm_to_vmem [thread:$0]  %s2, 1024, %s25, [#allocation3], 64, 64, 4
    $region13: #{tpu_custom_call.1} parent=1 // pred_fallthru
      _
    // Predicated region
    $region14: #{tpu_custom_call.1} parent=1 // pred_check
      _
    $region15: #{tpu_custom_call.1} parent=1 // pred_check_branch
      %32 = sbr.rel (0) target = $region17
    $region16: #{tpu_custom_call.1} parent=1 // pred_region
      %s34 = ssub.s32 1024, 1024
      %35 = vsyncadd [#allocation6], %s34
      %s36 = sshll.u32 [#allocation5], 4
      %s37 = int_to_ptr.vmem [resolvable:$true] %s36
      %42 = dma.hbm_to_vmem [thread:$0]  %s3, 1024, %s37, [#allocation6], 64, 64, 4
    $region17: #{tpu_custom_call.1} parent=1 // pred_fallthru
      _
    // Predicated region
    $region18: #{tpu_custom_call.1} parent=1 // pred_check
      _
    $region19: #{tpu_custom_call.1} parent=1 // pred_check_branch
      %44 = sbr.rel (0) target = $region21
    $region20: #{tpu_custom_call.1} parent=1 // pred_region
      _
    $region21: #{tpu_custom_call.1} parent=1 // pred_fallthru
      _
    // Predicated region
    $region22: #{tpu_custom_call.1} parent=1 // pred_check
      _
    $region23: #{tpu_custom_call.1} parent=1 // pred_check_branch
      %46 = sbr.rel (0) target = $region25
    $region24: #{tpu_custom_call.1} parent=1 // pred_region
      %s48 = ssub.s32 1024, 1024
      %49 = vsyncadd [#allocation6], %s48
      %s50 = sshll.u32 [#allocation7], 4
      %s51 = int_to_ptr.vmem [resolvable:$true] %s50
      %56 = dma.hbm_to_vmem [thread:$0]  %s5, 1024, %s51, [#allocation6], 64, 64, 4
    $region25: #{tpu_custom_call.1} parent=1 // pred_fallthru
      _
    // Predicated region
    $region26: #{tpu_custom_call.1} parent=1 // pred_check
      _
    $region27: #{tpu_custom_call.1} parent=1 // pred_check_branch
      %58 = sbr.rel (0) target = $region29
    $region28: #{tpu_custom_call.1} parent=1 // pred_region
      _
    $region29: #{tpu_custom_call.1} parent=1 // pred_fallthru
      _
    // Predicated region
    $region30: #{tpu_custom_call.1} parent=1 // pred_check
      _
    $region31: #{tpu_custom_call.1} parent=1 // pred_check_branch
      %60 = sbr.rel (0) target = $region33
    $region32: #{tpu_custom_call.1} parent=1 // pred_region
      %61 = dma.done [#allocation3], 1024
    $region33: #{tpu_custom_call.1} parent=1 // pred_fallthru
      _
    // Predicated region
    $region34: #{tpu_custom_call.1} parent=1 // pred_check
      _
    $region35: #{tpu_custom_call.1} parent=1 // pred_check_branch
      %63 = sbr.rel (0) target = $region37
    $region36: #{tpu_custom_call.1} parent=1 // pred_region
      %64 = dma.done [#allocation6], 1024
    $region37: #{tpu_custom_call.1} parent=1 // pred_fallthru
      _
    // Predicated region
    $region38: #{tpu_custom_call.1} parent=1 // pred_check
      _
    $region39: #{tpu_custom_call.1} parent=1 // pred_check_branch
      %66 = sbr.rel (0) target = $region41
    $region40: #{tpu_custom_call.1} parent=1 // pred_region
      %67 = dma.done [#allocation6], 1024
    $region41: #{tpu_custom_call.1} parent=1 // pred_fallthru
      _
    %v69 = vld [vmem:[%s0] sm:$0xff]
    %v70 = vld [vmem:[%s0 + $0x8] sm:$0xff]
    %v71 = vld [vmem:[%s1] sm:$0x1]
    %73 = vset.pattern.permute.xlu0 0
    %74 = vperm.xlu0 %73, %v69
    %v75 = vpop.permute.xlu0 %74
    %78 = vset.pattern.permute.xlu0 0
    %79 = vperm.xlu0 %78, %v70
    %v80 = vpop.permute.xlu0 %79
    %v83 = vlaneseq
    %v84 = vshrl.u32 %v83, 7
    %v85 = vsub.s32 0, %v84
    %v86 = vrot.slane %v71, %v85
    %v88 = vmul.f32 %v75, %v86
    %v89 = vmul.f32 %v80, %v86
    %v90 = vand.u32 2147483647, %v88
    %vm91 = vcmp.le.f32.partialorder %v90, 0.7853982
    %vm92 = vcmp.lt.s32.totalorder %v88, 0
    %v93 = vand.u32 %v88, 2139095040
    %v94 = vshrl.u32 %v93, 23
    %v95 = vsub.s32 %v94, 127
    %v96 = vand.u32 2147483647, %v88
    %v97 = vand.u32 %v96, 8388607
    %v98 = vor.u32 %v97, 8388608
    %v99 = vsub.s32 0, %v98
    %v100 = vadd.s32 %v95, 1
    %vm101 = vcmp.gt.s32.totalorder %v100, 0
    %v102 = vsel %vm101, %v100, 0
    %v103 = vshrl.u32 %v102, 5
    %v104 = vand.u32 %v102, 31
    %v105 = vsub.s32 32, %v104
    %v106 = vshrl.u32 683565275, %v105
    %v107 = vshll.u32 683565275, %v104
    %v108 = vshrl.u32 2475754826, %v105
    %v109 = vor.u32 %v107, %v108
    %v110 = vshll.u32 2475754826, %v104
    %v111 = vshrl.u32 2131351028, %v105
    %v112 = vor.u32 %v110, %v111
    %v113 = vshll.u32 2131351028, %v104
    %v114 = vshrl.u32 2102212464, %v105
    %v115 = vor.u32 %v113, %v114
    %v116 = vshll.u32 2102212464, %v104
    %v117 = vshrl.u32 920167782, %v105
    %v118 = vor.u32 %v116, %v117
    %v119 = vshll.u32 920167782, %v104
    %v120 = vshrl.u32 1326507024, %v105
    %v121 = vor.u32 %v119, %v120
    %vm122 = vcmp.lt.s32.totalorder %v103, 1
    %vm123 = vcmp.lt.s32.totalorder %v103, 2
    %vm124 = vcmp.lt.s32.totalorder %v103, 3
    %vm125 = vcmp.lt.s32.totalorder %v103, 4
    %v126 = vsel %vm122, %v106, %v109
    %v127 = vsel %vm125, %v115, 2102212464
    %v128 = vsel %vm124, %v112, %v127
    %v129 = vsel %vm123, %v126, %v128
    %v130 = vsel %vm122, %v109, %v112
    %v131 = vsel %vm125, %v118, 920167782
    %v132 = vsel %vm124, %v115, %v131
    %v133 = vsel %vm123, %v130, %v132
    %v134 = vsel %vm122, %v112, %v115
    %v135 = vsel %vm125, %v121, 1326507024
    %v136 = vsel %vm124, %v118, %v135
    %v137 = vsel %vm123, %v134, %v136
    %v138 = vshll.u32 %v98, 8
    %v139 = vmul.u32.u64.compose %v138, %v137
    %v140 = vextract.low.u32 %v139
    %v141 = vextract.high.u32 %v139
    %v142 = vmul.u32.u64.compose %v138, %v133
    %v143 = vextract.low.u32 %v142
    %v144 = vextract.high.u32 %v142
    %v145 = vmul.u32 %v138, %v129
    %v146 = vadd.s32 %v141, %v143
    %vm147 = vc.u32 %v141, %v143
    %v148 = vadd.s32 %v144, 1
    %v149 = vsel %vm147, %v148, %v144
    %v150 = vadd.s32 %v145, %v149
    %v151 = vadd.s32 %v150, 536870912
    %v152 = vshrl.u32 %v151, 30
    %v153 = vshll.u32 %v152, 30
    %v154 = vsub.s32 %v150, %v153
    %vm155 = vcmp.lt.s32.totalorder %v154, 0
    %v156 = vsub.s32 0, %v154
    %v157 = vsel %vm155, %v156, %v154
    %v158 = vclz %v157
    %v159 = vsub.s32 %v158, 2
    %vm160 = vcmp.gt.s32.totalorder 0, %v159
    %v161 = vsel %vm160, 0, %v159
    %v162 = vsub.s32 32, %v161
    %v163 = vshll.u32 %v154, %v161
    %v164 = vshrl.u32 %v146, %v162
    %v165 = vor.u32 %v163, %v164
    %v166 = vsub.s32 4294967266, %v161
    %v167 = vadd.s32 %v166, 127
    %v168 = vshll.u32 %v167, 23
    %v169 = vor.u32 4788187, %v168
    %v170 = vand.u32 2147483647, %v169
    %v172 = vcvt.s32.f32 %v165
    %v173 = vmul.f32 %v172, %v170
    %v174 = vxor.u32 %v173, 2147483648
    %v175 = vsel %vm92, %v174, %v173
    %v176 = vsub.s32 4, %v152
    %v177 = vsel %vm92, %v176, %v152
    %v178 = vsel %vm91, %v88, %v175
    %v179 = vsel %vm91, 0, %v177
    %v180 = vcosq.f32.pop %v178
    %v181 = vsinq.f32.pop %v178
    %vm182 = vweird.f32 %v88
    %v183 = vand.u32 %v179, 3
    %vm184 = vcmp.lt.s32.totalorder %v183, 2
    %vm185 = vcmp.eq.s32.totalorder %v183, 0
    %v186 = vxor.u32 %v181, 2147483648
    %v187 = vsel %vm185, %v180, %v186
    %vm188 = vcmp.eq.s32.totalorder %v183, 2
    %v189 = vxor.u32 %v180, 2147483648
    %v190 = vsel %vm188, %v189, %v181
    %v191 = vsel %vm184, %v187, %v190
    %v192 = vsel %vm182, nan, %v191
    %v193 = vand.u32 2147483647, %v89
    %vm194 = vcmp.le.f32.partialorder %v193, 0.7853982
    %vm195 = vcmp.lt.s32.totalorder %v89, 0
    %v196 = vand.u32 %v89, 2139095040
    %v197 = vshrl.u32 %v196, 23
    %v198 = vsub.s32 %v197, 127
    %v199 = vand.u32 2147483647, %v89
    %v200 = vand.u32 %v199, 8388607
    %v201 = vor.u32 %v200, 8388608
    %v202 = vsub.s32 0, %v201
    %v203 = vadd.s32 %v198, 1
    %vm204 = vcmp.gt.s32.totalorder %v203, 0
    %v205 = vsel %vm204, %v203, 0
    %v206 = vshrl.u32 %v205, 5
    %v207 = vand.u32 %v205, 31
    %v208 = vsub.s32 32, %v207
    %v209 = vshrl.u32 683565275, %v208
    %v210 = vshll.u32 683565275, %v207
    %v211 = vshrl.u32 2475754826, %v208
    %v212 = vor.u32 %v210, %v211
    %v213 = vshll.u32 2475754826, %v207
    %v214 = vshrl.u32 2131351028, %v208
    %v215 = vor.u32 %v213, %v214
    %v216 = vshll.u32 2131351028, %v207
    %v217 = vshrl.u32 2102212464, %v208
    %v218 = vor.u32 %v216, %v217
    %v219 = vshll.u32 2102212464, %v207
    %v220 = vshrl.u32 920167782, %v208
    %v221 = vor.u32 %v219, %v220
    %v222 = vshll.u32 920167782, %v207
    %v223 = vshrl.u32 1326507024, %v208
    %v224 = vor.u32 %v222, %v223
    %vm225 = vcmp.lt.s32.totalorder %v206, 1
    %vm226 = vcmp.lt.s32.totalorder %v206, 2
    %vm227 = vcmp.lt.s32.totalorder %v206, 3
    %vm228 = vcmp.lt.s32.totalorder %v206, 4
    %v229 = vsel %vm225, %v209, %v212
    %v230 = vsel %vm228, %v218, 2102212464
    %v231 = vsel %vm227, %v215, %v230
    %v232 = vsel %vm226, %v229, %v231
    %v233 = vsel %vm225, %v212, %v215
    %v234 = vsel %vm228, %v221, 920167782
    %v235 = vsel %vm227, %v218, %v234
    %v236 = vsel %vm226, %v233, %v235
    %v237 = vsel %vm225, %v215, %v218
    %v238 = vsel %vm228, %v224, 1326507024
    %v239 = vsel %vm227, %v221, %v238
    %v240 = vsel %vm226, %v237, %v239
    %v241 = vshll.u32 %v201, 8
    %v242 = vmul.u32.u64.compose %v241, %v240
    %v243 = vextract.low.u32 %v242
    %v244 = vextract.high.u32 %v242
    %v245 = vmul.u32.u64.compose %v241, %v236
    %v246 = vextract.low.u32 %v245
    %v247 = vextract.high.u32 %v245
    %v248 = vmul.u32 %v241, %v232
    %v249 = vadd.s32 %v244, %v246
    %vm250 = vc.u32 %v244, %v246
    %v251 = vadd.s32 %v247, 1
    %v252 = vsel %vm250, %v251, %v247
    %v253 = vadd.s32 %v248, %v252
    %v254 = vadd.s32 %v253, 536870912
    %v255 = vshrl.u32 %v254, 30
    %v256 = vshll.u32 %v255, 30
    %v257 = vsub.s32 %v253, %v256
    %vm258 = vcmp.lt.s32.totalorder %v257, 0
    %v259 = vsub.s32 0, %v257
    %v260 = vsel %vm258, %v259, %v257
    %v261 = vclz %v260
    %v262 = vsub.s32 %v261, 2
    %vm263 = vcmp.gt.s32.totalorder 0, %v262
    %v264 = vsel %vm263, 0, %v262
    %v265 = vsub.s32 32, %v264
    %v266 = vshll.u32 %v257, %v264
    %v267 = vshrl.u32 %v249, %v265
    %v268 = vor.u32 %v266, %v267
    %v269 = vsub.s32 4294967266, %v264
    %v270 = vadd.s32 %v269, 127
    %v271 = vshll.u32 %v270, 23
    %v272 = vor.u32 4788187, %v271
    %v273 = vand.u32 2147483647, %v272
    %v275 = vcvt.s32.f32 %v268
    %v276 = vmul.f32 %v275, %v273
    %v277 = vxor.u32 %v276, 2147483648
    %v278 = vsel %vm195, %v277, %v276
    %v279 = vsub.s32 4, %v255
    %v280 = vsel %vm195, %v279, %v255
    %v281 = vsel %vm194, %v89, %v278
    %v282 = vsel %vm194, 0, %v280
    %v283 = vcosq.f32.pop %v281
    %v284 = vsinq.f32.pop %v281
    %vm285 = vweird.f32 %v89
    %v286 = vand.u32 %v282, 3
    %vm287 = vcmp.lt.s32.totalorder %v286, 2
    %vm288 = vcmp.eq.s32.totalorder %v286, 0
    %v289 = vxor.u32 %v284, 2147483648
    %v290 = vsel %vm288, %v283, %v289
    %vm291 = vcmp.eq.s32.totalorder %v286, 2
    %v292 = vxor.u32 %v283, 2147483648
    %v293 = vsel %vm291, %v292, %v284
    %v294 = vsel %vm287, %v290, %v293
    %v295 = vsel %vm285, nan, %v294
    %v296 = vpack.c.bf16 %v295, %v192
    %v297 = vand.u32 2147483647, %v88
    %vm298 = vcmp.le.f32.partialorder %v297, 0.7853982
    %vm299 = vcmp.lt.s32.totalorder %v88, 0
    %v300 = vand.u32 %v88, 2139095040
    %v301 = vshrl.u32 %v300, 23
    %v302 = vsub.s32 %v301, 127
    %v303 = vand.u32 2147483647, %v88
    %v304 = vand.u32 %v303, 8388607
    %v305 = vor.u32 %v304, 8388608
    %v306 = vsub.s32 0, %v305
    %v307 = vadd.s32 %v302, 1
    %vm308 = vcmp.gt.s32.totalorder %v307, 0
    %v309 = vsel %vm308, %v307, 0
    %v310 = vshrl.u32 %v309, 5
    %v311 = vand.u32 %v309, 31
    %v312 = vsub.s32 32, %v311
    %v313 = vshrl.u32 683565275, %v312
    %v314 = vshll.u32 683565275, %v311
    %v315 = vshrl.u32 2475754826, %v312
    %v316 = vor.u32 %v314, %v315
    %v317 = vshll.u32 2475754826, %v311
    %v318 = vshrl.u32 2131351028, %v312
    %v319 = vor.u32 %v317, %v318
    %v320 = vshll.u32 2131351028, %v311
    %v321 = vshrl.u32 2102212464, %v312
    %v322 = vor.u32 %v320, %v321
    %v323 = vshll.u32 2102212464, %v311
    %v324 = vshrl.u32 920167782, %v312
    %v325 = vor.u32 %v323, %v324
    %v326 = vshll.u32 920167782, %v311
    %v327 = vshrl.u32 1326507024, %v312
    %v328 = vor.u32 %v326, %v327
    %vm329 = vcmp.lt.s32.totalorder %v310, 1
    %vm330 = vcmp.lt.s32.totalorder %v310, 2
    %vm331 = vcmp.lt.s32.totalorder %v310, 3
    %vm332 = vcmp.lt.s32.totalorder %v310, 4
    %v333 = vsel %vm329, %v313, %v316
    %v334 = vsel %vm332, %v322, 2102212464
    %v335 = vsel %vm331, %v319, %v334
    %v336 = vsel %vm330, %v333, %v335
    %v337 = vsel %vm329, %v316, %v319
    %v338 = vsel %vm332, %v325, 920167782
    %v339 = vsel %vm331, %v322, %v338
    %v340 = vsel %vm330, %v337, %v339
    %v341 = vsel %vm329, %v319, %v322
    %v342 = vsel %vm332, %v328, 1326507024
    %v343 = vsel %vm331, %v325, %v342
    %v344 = vsel %vm330, %v341, %v343
    %v345 = vshll.u32 %v305, 8
    %v346 = vmul.u32.u64.compose %v345, %v344
    %v347 = vextract.low.u32 %v346
    %v348 = vextract.high.u32 %v346
    %v349 = vmul.u32.u64.compose %v345, %v340
    %v350 = vextract.low.u32 %v349
    %v351 = vextract.high.u32 %v349
    %v352 = vmul.u32 %v345, %v336
    %v353 = vadd.s32 %v348, %v350
    %vm354 = vc.u32 %v348, %v350
    %v355 = vadd.s32 %v351, 1
    %v356 = vsel %vm354, %v355, %v351
    %v357 = vadd.s32 %v352, %v356
    %v358 = vadd.s32 %v357, 536870912
    %v359 = vshrl.u32 %v358, 30
    %v360 = vshll.u32 %v359, 30
    %v361 = vsub.s32 %v357, %v360
    %vm362 = vcmp.lt.s32.totalorder %v361, 0
    %v363 = vsub.s32 0, %v361
    %v364 = vsel %vm362, %v363, %v361
    %v365 = vclz %v364
    %v366 = vsub.s32 %v365, 2
    %vm367 = vcmp.gt.s32.totalorder 0, %v366
    %v368 = vsel %vm367, 0, %v366
    %v369 = vsub.s32 32, %v368
    %v370 = vshll.u32 %v361, %v368
    %v371 = vshrl.u32 %v353, %v369
    %v372 = vor.u32 %v370, %v371
    %v373 = vsub.s32 4294967266, %v368
    %v374 = vadd.s32 %v373, 127
    %v375 = vshll.u32 %v374, 23
    %v376 = vor.u32 4788187, %v375
    %v377 = vand.u32 2147483647, %v376
    %v379 = vcvt.s32.f32 %v372
    %v380 = vmul.f32 %v379, %v377
    %v381 = vxor.u32 %v380, 2147483648
    %v382 = vsel %vm299, %v381, %v380
    %v383 = vsub.s32 4, %v359
    %v384 = vsel %vm299, %v383, %v359
    %v385 = vsel %vm298, %v88, %v382
    %v386 = vsel %vm298, 0, %v384
    %v387 = vcosq.f32.pop %v385
    %v388 = vsinq.f32.pop %v385
    %vm389 = vweird.f32 %v88
    %v390 = vadd.s32 %v386, 3
    %v391 = vand.u32 %v390, 3
    %vm392 = vcmp.lt.s32.totalorder %v391, 2
    %vm393 = vcmp.eq.s32.totalorder %v391, 0
    %v394 = vxor.u32 %v388, 2147483648
    %v395 = vsel %vm393, %v387, %v394
    %vm396 = vcmp.eq.s32.totalorder %v391, 2
    %v397 = vxor.u32 %v387, 2147483648
    %v398 = vsel %vm396, %v397, %v388
    %v399 = vsel %vm392, %v395, %v398
    %v400 = vsel %vm389, nan, %v399
    %v401 = vand.u32 2147483647, %v89
    %vm402 = vcmp.le.f32.partialorder %v401, 0.7853982
    %vm403 = vcmp.lt.s32.totalorder %v89, 0
    %v404 = vand.u32 %v89, 2139095040
    %v405 = vshrl.u32 %v404, 23
    %v406 = vsub.s32 %v405, 127
    %v407 = vand.u32 2147483647, %v89
    %v408 = vand.u32 %v407, 8388607
    %v409 = vor.u32 %v408, 8388608
    %v410 = vsub.s32 0, %v409
    %v411 = vadd.s32 %v406, 1
    %vm412 = vcmp.gt.s32.totalorder %v411, 0
    %v413 = vsel %vm412, %v411, 0
    %v414 = vshrl.u32 %v413, 5
    %v415 = vand.u32 %v413, 31
    %v416 = vsub.s32 32, %v415
    %v417 = vshrl.u32 683565275, %v416
    %v418 = vshll.u32 683565275, %v415
    %v419 = vshrl.u32 2475754826, %v416
    %v420 = vor.u32 %v418, %v419
    %v421 = vshll.u32 2475754826, %v415
    %v422 = vshrl.u32 2131351028, %v416
    %v423 = vor.u32 %v421, %v422
    %v424 = vshll.u32 2131351028, %v415
    %v425 = vshrl.u32 2102212464, %v416
    %v426 = vor.u32 %v424, %v425
    %v427 = vshll.u32 2102212464, %v415
    %v428 = vshrl.u32 920167782, %v416
    %v429 = vor.u32 %v427, %v428
    %v430 = vshll.u32 920167782, %v415
    %v431 = vshrl.u32 1326507024, %v416
    %v432 = vor.u32 %v430, %v431
    %vm433 = vcmp.lt.s32.totalorder %v414, 1
    %vm434 = vcmp.lt.s32.totalorder %v414, 2
    %vm435 = vcmp.lt.s32.totalorder %v414, 3
    %vm436 = vcmp.lt.s32.totalorder %v414, 4
    %v437 = vsel %vm433, %v417, %v420
    %v438 = vsel %vm436, %v426, 2102212464
    %v439 = vsel %vm435, %v423, %v438
    %v440 = vsel %vm434, %v437, %v439
    %v441 = vsel %vm433, %v420, %v423
    %v442 = vsel %vm436, %v429, 920167782
    %v443 = vsel %vm435, %v426, %v442
    %v444 = vsel %vm434, %v441, %v443
    %v445 = vsel %vm433, %v423, %v426
    %v446 = vsel %vm436, %v432, 1326507024
    %v447 = vsel %vm435, %v429, %v446
    %v448 = vsel %vm434, %v445, %v447
    %v449 = vshll.u32 %v409, 8
    %v450 = vmul.u32.u64.compose %v449, %v448
    %v451 = vextract.low.u32 %v450
    %v452 = vextract.high.u32 %v450
    %v453 = vmul.u32.u64.compose %v449, %v444
    %v454 = vextract.low.u32 %v453
    %v455 = vextract.high.u32 %v453
    %v456 = vmul.u32 %v449, %v440
    %v457 = vadd.s32 %v452, %v454
    %vm458 = vc.u32 %v452, %v454
    %v459 = vadd.s32 %v455, 1
    %v460 = vsel %vm458, %v459, %v455
    %v461 = vadd.s32 %v456, %v460
    %v462 = vadd.s32 %v461, 536870912
    %v463 = vshrl.u32 %v462, 30
    %v464 = vshll.u32 %v463, 30
    %v465 = vsub.s32 %v461, %v464
    %vm466 = vcmp.lt.s32.totalorder %v465, 0
    %v467 = vsub.s32 0, %v465
    %v468 = vsel %vm466, %v467, %v465
    %v469 = vclz %v468
    %v470 = vsub.s32 %v469, 2
    %vm471 = vcmp.gt.s32.totalorder 0, %v470
    %v472 = vsel %vm471, 0, %v470
    %v473 = vsub.s32 32, %v472
    %v474 = vshll.u32 %v465, %v472
    %v475 = vshrl.u32 %v457, %v473
    %v476 = vor.u32 %v474, %v475
    %v477 = vsub.s32 4294967266, %v472
    %v478 = vadd.s32 %v477, 127
    %v479 = vshll.u32 %v478, 23
    %v480 = vor.u32 4788187, %v479
    %v481 = vand.u32 2147483647, %v480
    %v483 = vcvt.s32.f32 %v476
    %v484 = vmul.f32 %v483, %v481
    %v485 = vxor.u32 %v484, 2147483648
    %v486 = vsel %vm403, %v485, %v484
    %v487 = vsub.s32 4, %v463
    %v488 = vsel %vm403, %v487, %v463
    %v489 = vsel %vm402, %v89, %v486
    %v490 = vsel %vm402, 0, %v488
    %v491 = vcosq.f32.pop %v489
    %v492 = vsinq.f32.pop %v489
    %vm493 = vweird.f32 %v89
    %v494 = vadd.s32 %v490, 3
    %v495 = vand.u32 %v494, 3
    %vm496 = vcmp.lt.s32.totalorder %v495, 2
    %vm497 = vcmp.eq.s32.totalorder %v495, 0
    %v498 = vxor.u32 %v492, 2147483648
    %v499 = vsel %vm497, %v491, %v498
    %vm500 = vcmp.eq.s32.totalorder %v495, 2
    %v501 = vxor.u32 %v491, 2147483648
    %v502 = vsel %vm500, %v501, %v492
    %v503 = vsel %vm496, %v499, %v502
    %v504 = vsel %vm493, nan, %v503
    %v505 = vpack.c.bf16 %v504, %v400
    %v506 = vld [vmem:[#allocation2] sm:$0xf]
    %v507 = vld [vmem:[#allocation2 + $0x4] sm:$0xf]
    %v508 = vld [vmem:[#allocation2 + $0x8] sm:$0xf]
    %v509 = vld [vmem:[#allocation2 + $0xc] sm:$0xf]
    %v510 = vld [vmem:[#allocation2 + $0x10] sm:$0xf]
    %v511 = vld [vmem:[#allocation2 + $0x14] sm:$0xf]
    %v512 = vld [vmem:[#allocation2 + $0x18] sm:$0xf]
    %v513 = vld [vmem:[#allocation2 + $0x1c] sm:$0xf]
    %v514 = vld [vmem:[#allocation2 + $0x20] sm:$0xf]
    %v515 = vld [vmem:[#allocation2 + $0x24] sm:$0xf]
    %v516 = vld [vmem:[#allocation2 + $0x28] sm:$0xf]
    %v517 = vld [vmem:[#allocation2 + $0x2c] sm:$0xf]
    %v518 = vld [vmem:[#allocation2 + $0x30] sm:$0xf]
    %v519 = vld [vmem:[#allocation2 + $0x34] sm:$0xf]
    %v520 = vld [vmem:[#allocation2 + $0x38] sm:$0xf]
    %v521 = vld [vmem:[#allocation2 + $0x3c] sm:$0xf]
    %v522 = vld [vmem:[#allocation5] sm:$0xf]
    %v523 = vld [vmem:[#allocation5 + $0x4] sm:$0xf]
    %v524 = vld [vmem:[#allocation5 + $0x8] sm:$0xf]
    %v525 = vld [vmem:[#allocation5 + $0xc] sm:$0xf]
    %v526 = vld [vmem:[#allocation5 + $0x10] sm:$0xf]
    %v527 = vld [vmem:[#allocation5 + $0x14] sm:$0xf]
    %v528 = vld [vmem:[#allocation5 + $0x18] sm:$0xf]
    %v529 = vld [vmem:[#allocation5 + $0x1c] sm:$0xf]
    %v530 = vld [vmem:[#allocation5 + $0x20] sm:$0xf]
    %v531 = vld [vmem:[#allocation5 + $0x24] sm:$0xf]
    %v532 = vld [vmem:[#allocation5 + $0x28] sm:$0xf]
    %v533 = vld [vmem:[#allocation5 + $0x2c] sm:$0xf]
    %v534 = vld [vmem:[#allocation5 + $0x30] sm:$0xf]
    %v535 = vld [vmem:[#allocation5 + $0x34] sm:$0xf]
    %v536 = vld [vmem:[#allocation5 + $0x38] sm:$0xf]
    %v537 = vld [vmem:[#allocation5 + $0x3c] sm:$0xf]
    %v554 = vunpack.c.l.b16 %v522
    %v555 = vunpack.c.l.b16 %v523
    %v556 = vunpack.c.l.b16 %v524
    %v557 = vunpack.c.l.b16 %v525
    %v558 = vunpack.c.l.b16 %v526
    %v559 = vunpack.c.l.b16 %v527
    %v560 = vunpack.c.l.b16 %v528
    %v561 = vunpack.c.l.b16 %v529
    %v562 = vunpack.c.l.b16 %v530
    %v563 = vunpack.c.l.b16 %v531
    %v564 = vunpack.c.l.b16 %v532
    %v565 = vunpack.c.l.b16 %v533
    %v566 = vunpack.c.l.b16 %v534
    %v567 = vunpack.c.l.b16 %v535
    %v568 = vunpack.c.l.b16 %v536
    %v569 = vunpack.c.l.b16 %v537
    %v570 = vpack.c.b16 %v555, %v554
    %v571 = vpack.c.b16 %v557, %v556
    %v572 = vpack.c.b16 %v559, %v558
    %v573 = vpack.c.b16 %v561, %v560
    %v574 = vpack.c.b16 %v563, %v562
    %v575 = vpack.c.b16 %v565, %v564
    %v576 = vpack.c.b16 %v567, %v566
    %v577 = vpack.c.b16 %v569, %v568
    %586 = vmatprep.subr.bf16.mxu0 0
    %587 = vmatpush1.bf16.msra.mxu0 %v570
    %588 = vmatprep.subr.bf16.mxu0 0
    %589 = vmatpush1.bf16.msra.mxu0 %v571
    %590 = vmatprep.subr.bf16.mxu0 0
    %591 = vmatpush1.bf16.msra.mxu0 %v572
    %592 = vmatprep.subr.bf16.mxu0 0
    %593 = vmatpush1.bf16.msra.mxu0 %v573
    %594 = vmatprep.subr.bf16.mxu0 0
    %595 = vmatpush1.bf16.msra.mxu0 %v574
    %596 = vmatprep.subr.bf16.mxu0 0
    %597 = vmatpush1.bf16.msra.mxu0 %v575
    %598 = vmatprep.subr.bf16.mxu0 0
    %599 = vmatpush1.bf16.msra.mxu0 %v576
    %600 = vmatprep.subr.bf16.mxu0 0
    %601 = vmatpush1.bf16.msra.mxu0 %v577
    %602 = vmatprep.subr.bf16.mxu0 0
    %603 = vmatpush1.bf16.msra.mxu0 0
    %604 = vmatprep.subr.bf16.mxu0 0
    %605 = vmatpush1.bf16.msra.mxu0 0
    %606 = vmatprep.subr.bf16.mxu0 0
    %607 = vmatpush1.bf16.msra.mxu0 0
    %608 = vmatprep.subr.bf16.mxu0 0
    %609 = vmatpush1.bf16.msra.mxu0 0
    %610 = vmatprep.subr.bf16.mxu0 0
    %611 = vmatpush1.bf16.msra.mxu0 0
    %612 = vmatprep.subr.bf16.mxu0 0
    %613 = vmatpush1.bf16.msra.mxu0 0
    %614 = vmatprep.subr.bf16.mxu0 0
    %615 = vmatpush1.bf16.msra.mxu0 0
    %616 = vmatprep.subr.bf16.mxu0 0
    %617 = vmatpush1.bf16.msra.mxu0 0
    %618 = vmatprep.mubr.bf16.mxu0 0
    %619 = vmatmul.mubr.bf16.gmra.mrb[0].mxu0 %v505
    %v620 = vpop.f32.mrb[0].mxu0
    %v621 = vadd.f32 0.0, %v620
    %v622 = vpop.f32.mrb[0].mxu0
    %v623 = vpop.f32.mrb[0].mxu0
    %v624 = vadd.f32 0.0, %v623
    %v625 = vpop.f32.mrb[0].mxu0
    %626 = vdwg.mxu0
    %v643 = vunpack.c.l.b16 %v506
    %v644 = vunpack.c.l.b16 %v507
    %v645 = vunpack.c.l.b16 %v508
    %v646 = vunpack.c.l.b16 %v509
    %v647 = vunpack.c.l.b16 %v510
    %v648 = vunpack.c.l.b16 %v511
    %v649 = vunpack.c.l.b16 %v512
    %v650 = vunpack.c.l.b16 %v513
    %v651 = vunpack.c.l.b16 %v514
    %v652 = vunpack.c.l.b16 %v515
    %v653 = vunpack.c.l.b16 %v516
    %v654 = vunpack.c.l.b16 %v517
    %v655 = vunpack.c.l.b16 %v518
    %v656 = vunpack.c.l.b16 %v519
    %v657 = vunpack.c.l.b16 %v520
    %v658 = vunpack.c.l.b16 %v521
    %v659 = vpack.c.b16 %v644, %v643
    %v660 = vpack.c.b16 %v646, %v645
    %v661 = vpack.c.b16 %v648, %v647
    %v662 = vpack.c.b16 %v650, %v649
    %v663 = vpack.c.b16 %v652, %v651
    %v664 = vpack.c.b16 %v654, %v653
    %v665 = vpack.c.b16 %v656, %v655
    %v666 = vpack.c.b16 %v658, %v657
    %675 = vmatprep.subr.bf16.mxu0 0
    %676 = vmatpush1.bf16.msra.mxu0 %v659
    %677 = vmatprep.subr.bf16.mxu0 0
    %678 = vmatpush1.bf16.msra.mxu0 %v660
    %679 = vmatprep.subr.bf16.mxu0 0
    %680 = vmatpush1.bf16.msra.mxu0 %v661
    %681 = vmatprep.subr.bf16.mxu0 0
    %682 = vmatpush1.bf16.msra.mxu0 %v662
    %683 = vmatprep.subr.bf16.mxu0 0
    %684 = vmatpush1.bf16.msra.mxu0 %v663
    %685 = vmatprep.subr.bf16.mxu0 0
    %686 = vmatpush1.bf16.msra.mxu0 %v664
    %687 = vmatprep.subr.bf16.mxu0 0
    %688 = vmatpush1.bf16.msra.mxu0 %v665
    %689 = vmatprep.subr.bf16.mxu0 0
    %690 = vmatpush1.bf16.msra.mxu0 %v666
    %691 = vmatprep.subr.bf16.mxu0 0
    %692 = vmatpush1.bf16.msra.mxu0 0
    %693 = vmatprep.subr.bf16.mxu0 0
    %694 = vmatpush1.bf16.msra.mxu0 0
    %695 = vmatprep.subr.bf16.mxu0 0
    %696 = vmatpush1.bf16.msra.mxu0 0
    %697 = vmatprep.subr.bf16.mxu0 0
    %698 = vmatpush1.bf16.msra.mxu0 0
    %699 = vmatprep.subr.bf16.mxu0 0
    %700 = vmatpush1.bf16.msra.mxu0 0
    %701 = vmatprep.subr.bf16.mxu0 0
    %702 = vmatpush1.bf16.msra.mxu0 0
    %703 = vmatprep.subr.bf16.mxu0 0
    %704 = vmatpush1.bf16.msra.mxu0 0
    %705 = vmatprep.subr.bf16.mxu0 0
    %706 = vmatpush1.bf16.msra.mxu0 0
    %707 = vmatprep.mubr.bf16.mxu0 0
    %708 = vmatmul.mubr.bf16.gmra.mrb[0].mxu0 %v296
    %v709 = vpop.f32.mrb[0].mxu0
    %v710 = vadd.f32 %v621, %v709
    %v711 = vpop.f32.mrb[0].mxu0
    %v712 = vpop.f32.mrb[0].mxu0
    %v713 = vadd.f32 %v624, %v712
    %v714 = vpop.f32.mrb[0].mxu0
    %715 = vdwg.mxu0
    %v716 = vld [vmem:[%s4] sm:$0x1]
    %v718 = vlaneseq
    %v719 = vshrl.u32 %v718, 7
    %v720 = vsub.s32 0, %v719
    %v721 = vrot.slane %v716, %v720
    %v723 = vadd.f32 %v710, %v721
    %v724 = vadd.f32 %v713, %v721
    %v725 = vxor.u32 %v723, 2147483648
    %v726 = vxor.u32 %v724, 2147483648
    %v727 = vmul.f32 %v725, 1.442695
    %v728 = vpow.pop %v727
    %v729 = vmul.f32 %v726, 1.442695
    %v730 = vpow.pop %v729
    %v731 = vadd.f32 %v728, 1.0
    %v732 = vadd.f32 %v730, 1.0
    %v733 = vrcp.pop %v731
    %v734 = vmul.f32 1.0, %v733
    %v735 = vrcp.pop %v732
    %v736 = vmul.f32 1.0, %v735
    %v737 = vmul.f32 %v723, %v734
    %v738 = vmul.f32 %v724, %v736
    %v739 = vpack.c.bf16 %v738, %v737
    %v740 = vld [vmem:[#allocation7] sm:$0xf]
    %v741 = vld [vmem:[#allocation7 + $0x4] sm:$0xf]
    %v742 = vld [vmem:[#allocation7 + $0x8] sm:$0xf]
    %v743 = vld [vmem:[#allocation7 + $0xc] sm:$0xf]
    %v744 = vld [vmem:[#allocation7 + $0x10] sm:$0xf]
    %v745 = vld [vmem:[#allocation7 + $0x14] sm:$0xf]
    %v746 = vld [vmem:[#allocation7 + $0x18] sm:$0xf]
    %v747 = vld [vmem:[#allocation7 + $0x1c] sm:$0xf]
    %v748 = vld [vmem:[#allocation7 + $0x20] sm:$0xf]
    %v749 = vld [vmem:[#allocation7 + $0x24] sm:$0xf]
    %v750 = vld [vmem:[#allocation7 + $0x28] sm:$0xf]
    %v751 = vld [vmem:[#allocation7 + $0x2c] sm:$0xf]
    %v752 = vld [vmem:[#allocation7 + $0x30] sm:$0xf]
    %v753 = vld [vmem:[#allocation7 + $0x34] sm:$0xf]
    %v754 = vld [vmem:[#allocation7 + $0x38] sm:$0xf]
    %v755 = vld [vmem:[#allocation7 + $0x3c] sm:$0xf]
    %v756 = vld [vmem:[%s6] sm:$0x1]
    %v758 = vlaneseq
    %v759 = vshrl.u32 %v758, 7
    %v760 = vsub.s32 0, %v759
    %v761 = vrot.slane %v756, %v760
    %v779 = vunpack.c.l.b16 %v740
    %v780 = vunpack.c.l.b16 %v741
    %v781 = vunpack.c.l.b16 %v742
    %v782 = vunpack.c.l.b16 %v743
    %v783 = vunpack.c.l.b16 %v744
    %v784 = vunpack.c.l.b16 %v745
    %v785 = vunpack.c.l.b16 %v746
    %v786 = vunpack.c.l.b16 %v747
    %v787 = vunpack.c.l.b16 %v748
    %v788 = vunpack.c.l.b16 %v749
    %v789 = vunpack.c.l.b16 %v750
    %v790 = vunpack.c.l.b16 %v751
    %v791 = vunpack.c.l.b16 %v752
    %v792 = vunpack.c.l.b16 %v753
    %v793 = vunpack.c.l.b16 %v754
    %v794 = vunpack.c.l.b16 %v755
    %v795 = vpack.c.b16 %v780, %v779
    %v796 = vpack.c.b16 %v782, %v781
    %v797 = vpack.c.b16 %v784, %v783
    %v798 = vpack.c.b16 %v786, %v785
    %v799 = vpack.c.b16 %v788, %v787
    %v800 = vpack.c.b16 %v790, %v789
    %v801 = vpack.c.b16 %v792, %v791
    %v802 = vpack.c.b16 %v794, %v793
    %811 = vmatprep.subr.bf16.mxu0 0
    %812 = vmatpush1.bf16.msra.mxu0 %v795
    %813 = vmatprep.subr.bf16.mxu0 0
    %814 = vmatpush1.bf16.msra.mxu0 %v796
    %815 = vmatprep.subr.bf16.mxu0 0
    %816 = vmatpush1.bf16.msra.mxu0 %v797
    %817 = vmatprep.subr.bf16.mxu0 0
    %818 = vmatpush1.bf16.msra.mxu0 %v798
    %819 = vmatprep.subr.bf16.mxu0 0
    %820 = vmatpush1.bf16.msra.mxu0 %v799
    %821 = vmatprep.subr.bf16.mxu0 0
    %822 = vmatpush1.bf16.msra.mxu0 %v800
    %823 = vmatprep.subr.bf16.mxu0 0
    %824 = vmatpush1.bf16.msra.mxu0 %v801
    %825 = vmatprep.subr.bf16.mxu0 0
    %826 = vmatpush1.bf16.msra.mxu0 %v802
    %827 = vmatprep.subr.bf16.mxu0 0
    %828 = vmatpush1.bf16.msra.mxu0 0
    %829 = vmatprep.subr.bf16.mxu0 0
    %830 = vmatpush1.bf16.msra.mxu0 0
    %831 = vmatprep.subr.bf16.mxu0 0
    %832 = vmatpush1.bf16.msra.mxu0 0
    %833 = vmatprep.subr.bf16.mxu0 0
    %834 = vmatpush1.bf16.msra.mxu0 0
    %835 = vmatprep.subr.bf16.mxu0 0
    %836 = vmatpush1.bf16.msra.mxu0 0
    %837 = vmatprep.subr.bf16.mxu0 0
    %838 = vmatpush1.bf16.msra.mxu0 0
    %839 = vmatprep.subr.bf16.mxu0 0
    %840 = vmatpush1.bf16.msra.mxu0 0
    %841 = vmatprep.subr.bf16.mxu0 0
    %842 = vmatpush1.bf16.msra.mxu0 0
    %843 = vmatprep.mubr.bf16.mxu0 0
    %844 = vmatmul.mubr.bf16.gmra.mrb[0].mxu0 %v739
    %v845 = vpop.f32.mrb[0].mxu0
    %v846 = vadd.f32 %v761, %v845
    %v847 = vpop.f32.mrb[0].mxu0
    %v848 = vpop.f32.mrb[0].mxu0
    %v849 = vadd.f32 %v761, %v848
    %v850 = vpop.f32.mrb[0].mxu0
    %851 = vdwg.mxu0
    %852 = vst [vmem:[#allocation8] sm:$0xff] %v846
    %853 = vst [vmem:[#allocation8 + $0x8] sm:$0xff] %v849
    // Predicated region
    $region42: #{tpu_custom_call.1} parent=1 // pred_check
      _
    $region43: #{tpu_custom_call.1} parent=1 // pred_check_branch
      %855 = sbr.rel (0) target = $region45
    $region44: #{tpu_custom_call.1} parent=1 // pred_region
      %s857 = ssub.s32 256, 256
      %858 = vsyncadd [#allocation4], %s857
      %s859 = sshll.u32 [#allocation8], 4
      %s860 = int_to_ptr.vmem [resolvable:$true] %s859
      %865 = dma.vmem_to_hbm [thread:$0]  %s860, 256, %s7, [#allocation4], 128, 128, 8
    $region45: #{tpu_custom_call.1} parent=1 // pred_fallthru
      _
    // Predicated region
    $region46: #{tpu_custom_call.1} parent=1 // pred_check
      _
    $region47: #{tpu_custom_call.1} parent=1 // pred_check_branch
      %867 = sbr.rel (0) target = $region49
    $region48: #{tpu_custom_call.1} parent=1 // pred_region
      %868 = dma.done [#allocation4], 256
    $region49: #{tpu_custom_call.1} parent=1 // pred_fallthru
      _
    %869 = vsyncpa [#allocation3], 1
    %870 = vsyncpa [#allocation6], 1
    %871 = vsyncpa [#allocation4], 1

</llo_original>
